<compile_context>
chip_gen: v5e
topology: v5e:2x2
jax: 0.10.0
libtpu: 0.0.40
codegen_flags: <defaults>
</compile_context>

<pallas_src>
import functools

import jax
import jax.numpy as jnp
from jax.experimental import pallas as pl
from jax.experimental.pallas import tpu as pltpu

LANES = 128
ACC_SUBLANES = 8        # one f32 vreg = (8, 128)
CHUNK_ROWS = 256        # 128 KiB f32 per operand sub-chunk; accumulator height


def _chip_defaults():
    """(max_tile_rows, num_cores) per TPU generation; conservative fallback."""
    try:
        kind = jax.devices()[0].device_kind.lower()
    except Exception:
        kind = ""
    if "v7" in kind or "7x" in kind:
        return 8192, 2          # 4 MiB f32 blocks, 2 TensorCores per chip
    if "v6" in kind:
        return 4096, 1          # 2 MiB f32 blocks, single TC
    if "v5" in kind:
        return 2048, 1          # 1 MiB f32 blocks already hides step overhead
    return 2048, 1              # unknown: correct & safe everywhere


def _margin_sum_kernel(p_ref, l_ref, out_ref, acc_ref, *,
                       n_rows, tile_rows, chunk_rows, needs_mask):
    c = pl.program_id(0)            # per-core split ("parallel")
    i = pl.program_id(1)            # row-tile walk ("arbitrary" / reduction)
    n_inner = pl.num_programs(1)
    n_chunks = tile_rows // chunk_rows

    @pl.when(i == 0)
    def _init():
        acc_ref[...] = jnp.zeros_like(acc_ref)

    def fold_tile(masked):
        if masked:
            row0 = (c * n_inner + i) * tile_rows

        def body(k, carry):
            r0 = pl.multiple_of(k * chunk_rows, chunk_rows)
            # Cast in-kernel (free VPU op) so bf16 inputs are never upcast in HBM.
            p = p_ref[pl.ds(r0, chunk_rows), :].astype(jnp.float32)
            l = l_ref[pl.ds(r0, chunk_rows), :].astype(jnp.float32)
            clipped = jnp.maximum(p - l, jnp.float32(0.0))
            if masked:
                # Mask rows past the logical end of the array (partial last
                # tile, clamped overshoot tiles). where (not multiply) so
                # garbage / NaN from edge-block padding never reaches the sum.
                row_idx = (row0 + r0) + jax.lax.broadcasted_iota(
                    jnp.int32, (chunk_rows, LANES), 0)
                clipped = jnp.where(row_idx < n_rows, clipped, jnp.float32(0.0))
            acc_ref[...] += clipped         # pure VPU adds, no reshape temps
            return carry

        jax.lax.fori_loop(0, n_chunks, body, 0, unroll=True)

    if needs_mask:
        row0_tile = (c * n_inner + i) * tile_rows
        tile_is_full = row0_tile + tile_rows <= n_rows

        @pl.when(tile_is_full)
        def _fast():
            fold_tile(masked=False)

        @pl.when(jnp.logical_not(tile_is_full))
        def _tail():
            fold_tile(masked=True)
    else:
        fold_tile(masked=False)

    # Single expensive cross-lane/sublane reduce, once per core.
    @pl.when(i == n_inner - 1)
    def _finalize():
        out_ref[0, 0] = jnp.sum(acc_ref[...])


def similarity_margin_loss(predict, label):
    """JAX/Pallas equivalent of SimilarityMarginLoss.forward."""
    assert predict.shape == label.shape
    n_elems = predict.size

    p_flat = predict.reshape(-1)
    l_flat = label.reshape(-1)

    n_rows = n_elems // LANES
    n_main = n_rows * LANES

    total = jnp.zeros((), jnp.float32)

    if n_rows > 0:
        if n_main == n_elems:
            # Contiguous reshape: free, no HBM copy (common case).
            p2 = p_flat.reshape(n_rows, LANES)
            l2 = l_flat.reshape(n_rows, LANES)
        else:
            # Rare lane-misaligned case: kernel on the aligned prefix only; no
            # full-array zero-pad copy of both inputs.
            p2 = p_flat[:n_main].reshape(n_rows, LANES)
            l2 = l_flat[:n_main].reshape(n_rows, LANES)

        max_tile_rows, num_cores = _chip_defaults()

        # Tile rows: as large as the generation allows, never exceeding the
        # array (so blocks are always <= array dims), multiple of the chunk.
        if n_rows >= max_tile_rows:
            tile_rows = max_tile_rows
        elif n_rows >= CHUNK_ROWS:
            tile_rows = (n_rows // CHUNK_ROWS) * CHUNK_ROWS
        elif n_rows >= ACC_SUBLANES:
            tile_rows = (n_rows // ACC_SUBLANES) * ACC_SUBLANES
        else:
            tile_rows = n_rows          # block == full array dims (legal)
        chunk_rows = min(CHUNK_ROWS, tile_rows)

        total_tiles = pl.cdiv(n_rows, tile_rows)
        num_cores = min(num_cores, total_tiles)   # don't split 1 tile over 2 TCs
        inner_tiles = pl.cdiv(total_tiles, num_cores)
        needs_mask = (n_rows % tile_rows != 0) or \
                     (num_cores * inner_tiles != total_tiles)

        def in_map(c, i):
            # Clamp so overshoot tiles stay in bounds; the in-kernel row mask
            # zeroes their contribution.
            return (jnp.minimum(c * inner_tiles + i, total_tiles - 1), 0)

        itemsize = jnp.dtype(predict.dtype).itemsize
        block_bytes = tile_rows * LANES * itemsize
        # 2 inputs x 2 pipeline buffers + accumulator + per-chunk f32 temps.
        vmem_needed = (4 * block_bytes + 5 * chunk_rows * LANES * 4 + (2 << 20))
        vmem_limit = int(min(max(vmem_needed, 16 << 20), 40 << 20))

        kernel = functools.partial(
            _margin_sum_kernel, n_rows=n_rows, tile_rows=tile_rows,
            chunk_rows=chunk_rows, needs_mask=needs_mask)

        partials = pl.pallas_call(
            kernel,
            out_shape=jax.ShapeDtypeStruct((num_cores, 1), jnp.float32),
            grid=(num_cores, inner_tiles),
            in_specs=[
                pl.BlockSpec((tile_rows, LANES), in_map),
                pl.BlockSpec((tile_rows, LANES), in_map),
            ],
            out_specs=pl.BlockSpec((1, 1), lambda c, i: (c, 0),
                                   memory_space=pltpu.SMEM),
            scratch_shapes=[pltpu.VMEM((chunk_rows, LANES), jnp.float32)],
            compiler_params=pltpu.CompilerParams(
                dimension_semantics=("parallel", "arbitrary"),
                vmem_limit_bytes=vmem_limit),
            cost_estimate=pl.CostEstimate(
                flops=2 * n_main,
                transcendentals=0,
                bytes_accessed=2 * n_main * itemsize + num_cores * 4),
        )(p2, l2)
        total = total + jnp.sum(partials)

    if n_main != n_elems:
        # <128-element remainder: trivial wrapper-side reduction.
        tail_p = p_flat[n_main:].astype(jnp.float32)
        tail_l = l_flat[n_main:].astype(jnp.float32)
        total = total + jnp.sum(jnp.maximum(tail_p - tail_l, jnp.float32(0.0)))

    # Mean over the ORIGINAL element count (matches torch .mean()).
    return (total / jnp.float32(n_elems)).astype(predict.dtype)


if __name__ == "__main__":
    key = jax.random.PRNGKey(0)
    k1, k2 = jax.random.split(key)
    # Small NCHW-like shapes, consistent with a segmentation-style loss input.
    predict = jax.random.normal(k1, (2, 4, 16, 16), dtype=jnp.float32)
    label = jax.random.normal(k2, (2, 4, 16, 16), dtype=jnp.float32)

    loss = similarity_margin_loss(predict, label)
    jax.block_until_ready(loss)

    # Pure-JAX reference check.
    ref = jnp.mean(jnp.maximum(predict - label, 0.0))
    assert jnp.allclose(loss, ref, rtol=1e-6, atol=1e-6), (loss, ref)

    print("KERNEL_OK")
</pallas_src>

<mosaic_0001>
module attributes {stable_mosaic.version = 11 : i64} {
  func.func @_margin_sum_kernel(%arg0: i32, %arg1: i32, %arg2: memref<16x128xf32, #tpu.memory_space<vmem>>, %arg3: memref<16x128xf32, #tpu.memory_space<vmem>>, %arg4: memref<1x1xf32, #tpu.memory_space<smem>>, %arg5: memref<16x128xf32, #tpu.memory_space<vmem>>) attributes {dimension_semantics = [#tpu.dimension_semantics<parallel>, #tpu.dimension_semantics<arbitrary>], iteration_bounds = array<i64: 1, 1>, scalar_prefetch = 0 : i64, scratch_operands = 1 : i64, tpu.core_type = #tpu.core_type<tc>, window_params = [{transform_indices = @transform_0, window_bounds = array<i64: 16, 128>}, {transform_indices = @transform_1, window_bounds = array<i64: 16, 128>}, {transform_indices = @transform_2, window_bounds = array<i64: 1, 1>}]} {
    %c0_i32 = arith.constant 0 : i32
    %0 = arith.cmpi eq, %arg1, %c0_i32 : i32
    %1 = arith.extui %0 : i1 to i32
    %c0_i32_0 = arith.constant 0 : i32
    %2 = arith.cmpi ne, %1, %c0_i32_0 : i32
    scf.if %2 {
      %cst_9 = arith.constant 0.000000e+00 : f32
      %18 = vector.broadcast %cst_9 : f32 to vector<16x128xf32>
      %c0_10 = arith.constant 0 : index
      %c0_11 = arith.constant 0 : index
      %19 = vector.load %arg5[%c0_10, %c0_11] : memref<16x128xf32, #tpu.memory_space<vmem>>, vector<16x128xf32>
      tpu.vector_store %arg5[%c0_10, %c0_11], %18 {strides = array<i32>} : memref<16x128xf32, #tpu.memory_space<vmem>>, vector<16x128xf32>,
    } else {
    }
    %c0_i32_1 = arith.constant 0 : i32
    %c16_i32 = arith.constant 16 : i32
    %3 = arith.muli %c0_i32_1, %c16_i32 : i32
    %4 = tpu.assume_multiple %3, 16 : i32
    %5 = arith.index_cast %4 : i32 to index
    %c0 = arith.constant 0 : index
    %6 = vector.load %arg2[%5, %c0] : memref<16x128xf32, #tpu.memory_space<vmem>>, vector<16x128xf32>
    %7 = arith.index_cast %4 : i32 to index
    %c0_2 = arith.constant 0 : index
    %8 = vector.load %arg3[%7, %c0_2] : memref<16x128xf32, #tpu.memory_space<vmem>>, vector<16x128xf32>
    %9 = arith.subf %6, %8 : vector<16x128xf32>
    %cst = arith.constant 0.000000e+00 : f32
    %10 = vector.broadcast %cst : f32 to vector<16x128xf32>
    %11 = arith.maximumf %9, %10 : vector<16x128xf32>
    %c0_3 = arith.constant 0 : index
    %c0_4 = arith.constant 0 : index
    %12 = vector.load %arg5[%c0_3, %c0_4] : memref<16x128xf32, #tpu.memory_space<vmem>>, vector<16x128xf32>
    %13 = arith.addf %12, %11 : vector<16x128xf32>
    %c0_5 = arith.constant 0 : index
    %c0_6 = arith.constant 0 : index
    %14 = vector.load %arg5[%c0_5, %c0_6] : memref<16x128xf32, #tpu.memory_space<vmem>>, vector<16x128xf32>
    tpu.vector_store %arg5[%c0_5, %c0_6], %13 {strides = array<i32>} : memref<16x128xf32, #tpu.memory_space<vmem>>, vector<16x128xf32>,
    %c1_i32 = arith.constant 1 : i32
    %c0_i32_7 = arith.constant 0 : i32
    %15 = arith.cmpi eq, %arg1, %c0_i32_7 : i32
    %16 = arith.extui %15 : i1 to i32
    %c0_i32_8 = arith.constant 0 : i32
    %17 = arith.cmpi ne, %16, %c0_i32_8 : i32
    scf.if %17 {
      %c0_9 = arith.constant 0 : index
      %c0_10 = arith.constant 0 : index
      %18 = vector.load %arg5[%c0_9, %c0_10] : memref<16x128xf32, #tpu.memory_space<vmem>>, vector<16x128xf32>
      %19 = vector.shape_cast %18 : vector<16x128xf32> to vector<1x16x128xf32>
      %cst_11 = arith.constant dense<0.000000e+00> : vector<1xf32>
      %20 = vector.multi_reduction <add>, %19, %cst_11 [1, 2] : vector<1x16x128xf32> to vector<1xf32>
      %21 = vector.shape_cast %20 : vector<1xf32> to vector<1x1x1xf32>
      %22 = vector.extract %21[0, 0, 0] : f32 from vector<1x1x1xf32>
      %c0_12 = arith.constant 0 : index
      %c0_13 = arith.constant 0 : index
      %23 = memref.load %arg4[%c0_12, %c0_13] : memref<1x1xf32, #tpu.memory_space<smem>>
      memref.store %22, %arg4[%c0_12, %c0_13] : memref<1x1xf32, #tpu.memory_space<smem>>
    } else {
    }
    return
  }
  func.func @transform_0(%arg0: i32, %arg1: i32) -> (i32, i32) {
    %c1_i32 = arith.constant 1 : i32
    %0 = arith.muli %arg0, %c1_i32 : i32
    %1 = arith.addi %0, %arg1 : i32
    %c0_i32 = arith.constant 0 : i32
    %2 = arith.minsi %1, %c0_i32 : i32
    %c0_i32_0 = arith.constant 0 : i32
    %c0_i32_1 = arith.constant 0 : i32
    return %2, %c0_i32_0 : i32, i32
  }
  func.func @transform_1(%arg0: i32, %arg1: i32) -> (i32, i32) {
    %c1_i32 = arith.constant 1 : i32
    %0 = arith.muli %arg0, %c1_i32 : i32
    %1 = arith.addi %0, %arg1 : i32
    %c0_i32 = arith.constant 0 : i32
    %2 = arith.minsi %1, %c0_i32 : i32
    %c0_i32_0 = arith.constant 0 : i32
    %c0_i32_1 = arith.constant 0 : i32
    return %2, %c0_i32_0 : i32, i32
  }
  func.func @transform_2(%arg0: i32, %arg1: i32) -> (i32, i32) {
    %c0_i32 = arith.constant 0 : i32
    %c0_i32_0 = arith.constant 0 : i32
    return %arg0, %c0_i32 : i32, i32
  }
}

</mosaic_0001>

<llo_original>
// kernel: tpu_custom_call.1
$region0: #{tpu_custom_call.1}
  #allocation0 [shape = 'u32[]', space=smem, size = 0x4, offset = 0x4, fixed_abs, tag = 'smem constant byte address 0x4 - core index']
  #allocation1 [shape = 'u32[72,128]{1,0:T(1,128)}', space=vmem, size = 0x9000, scoped, tag = 'internal scratch']
  #allocation2 [shape = 'f32[16,128]{1,0:T(8,128)}', space=vmem, size = 0x2000, scoped, tag = 'scratch operand']
  %s0 = inlined_call_operand.hbm [shape: f32[16,128], index: 0, kind: input, shape index: {}]
  %s1 = inlined_call_operand.hbm [shape: f32[16,128], index: 1, kind: input, shape index: {}]
  %s2 = inlined_call_operand.hbm [shape: f32[1,1], index: 2, kind: output, shape index: {}]
  %s3 = sld [smem:[#allocation0]]
  $region34: #{tpu_custom_call.1} parent=0
    _
  %s5 = ssub.s32 1, %s3
  %s6 = scalar_select 0, %s5, %s3
  $region1: #{tpu_custom_call.1} parent=0
    #allocation3 [shape = 'u8[8192]{0}', space=vmem, size = 0x2000, scoped, tag = 'input window, operand 0, single buffered']
    #allocation4 [shape = 's32[1]{0}', space=sflag, size = 0x4, scoped, tag = 'scoped memory for tpu_custom_call.1']
    #allocation5 [shape = 's32[1]{0}', space=sflag, size = 0x4, scoped, tag = 'scoped memory for tpu_custom_call.1']
    #allocation6 [shape = 'u8[8192]{0}', space=vmem, size = 0x2000, scoped, tag = 'input window, operand 1, single buffered']
    #allocation7 [shape = 's32[1]{0}', space=sflag, size = 0x4, scoped, tag = 'scoped memory for tpu_custom_call.1']
    #allocation8 [shape = 'u8[512]{0}', space=smem, size = 0x200, scoped, tag = 'output window, operand 0, single buffered']
    %7 = vsyncpa [#allocation4], 0
    %8 = vsyncpa [#allocation7], 0
    %9 = vsyncpa [#allocation5], 0
    // Predicated region
    $region2: #{tpu_custom_call.1} parent=1 // pred_check
      _
    $region3: #{tpu_custom_call.1} parent=1 // pred_check_branch
      %11 = sbr.rel (0) target = $region5
    $region4: #{tpu_custom_call.1} parent=1 // pred_region
      %s12 = sadd.s32 0, 0
      %p13 = scmp.lt.s32.totalorder %s12, 0
      %s14 = scalar_select %p13, %s12, 0
      %s15 = smul.u32 2, %s14
      %17 = vsyncadd [#allocation4], 0
      %s18 = smul.addr %s15, 8
      %s19 = scalar_lea.hbm %s0, %s18
      %s20 = sshll.u32 %s19, 4
      %s21 = int_to_ptr.hbm [resolvable:$true] %s20
      %s22 = sshll.u32 [#allocation3], 4
      %s23 = int_to_ptr.vmem [resolvable:$true] %s22
      %28 = dma.hbm_to_vmem [thread:$0]  %s21, 256, %s23, [#allocation4], 128, 128, 8
    $region5: #{tpu_custom_call.1} parent=1 // pred_fallthru
      _
    // Predicated region
    $region6: #{tpu_custom_call.1} parent=1 // pred_check
      _
    $region7: #{tpu_custom_call.1} parent=1 // pred_check_branch
      %30 = sbr.rel (0) target = $region9
    $region8: #{tpu_custom_call.1} parent=1 // pred_region
      %s31 = sadd.s32 0, 0
      %p32 = scmp.lt.s32.totalorder %s31, 0
      %s33 = scalar_select %p32, %s31, 0
      %s34 = smul.u32 2, %s33
      %36 = vsyncadd [#allocation7], 0
      %s37 = smul.addr %s34, 8
      %s38 = scalar_lea.hbm %s1, %s37
      %s39 = sshll.u32 %s38, 4
      %s40 = int_to_ptr.hbm [resolvable:$true] %s39
      %s41 = sshll.u32 [#allocation6], 4
      %s42 = int_to_ptr.vmem [resolvable:$true] %s41
      %47 = dma.hbm_to_vmem [thread:$0]  %s40, 256, %s42, [#allocation7], 128, 128, 8
    $region9: #{tpu_custom_call.1} parent=1 // pred_fallthru
      _
    // Predicated region
    $region10: #{tpu_custom_call.1} parent=1 // pred_check
      _
    $region11: #{tpu_custom_call.1} parent=1 // pred_check_branch
      %49 = sbr.rel (0) target = $region13
    $region12: #{tpu_custom_call.1} parent=1 // pred_region
      %51 = dma.done [#allocation4], 256
    $region13: #{tpu_custom_call.1} parent=1 // pred_fallthru
      _
    // Predicated region
    $region14: #{tpu_custom_call.1} parent=1 // pred_check
      _
    $region15: #{tpu_custom_call.1} parent=1 // pred_check_branch
      %53 = sbr.rel (0) target = $region17
    $region16: #{tpu_custom_call.1} parent=1 // pred_region
      %55 = dma.done [#allocation7], 256
    $region17: #{tpu_custom_call.1} parent=1 // pred_fallthru
      _
    %s56 = sadd.s32 0, 0
    %p57 = scmp.lt.s32.totalorder %s56, 0
    %s58 = scalar_select %p57, %s56, 0
    %s59 = smul.u32 2, %s58
    %s60 = sadd.s32 0, 0
    %p61 = scmp.lt.s32.totalorder %s60, 0
    %s62 = scalar_select %p61, %s60, 0
    %s63 = smul.u32 2, %s62
    %p64 = scmp.eq.s32.totalorder 0, 0
    // Predicated region
    $region18: #{tpu_custom_call.1} parent=1 // pred_check
      %p65 = pneg %p64
    $region19: #{tpu_custom_call.1} parent=1 // pred_check_branch
      %67 = sbr.rel (%p65) target = $region21
    $region20: #{tpu_custom_call.1} parent=1 // pred_region
      %68 = vst [vmem:[#allocation2] sm:$0xff] 0.0
      %69 = vst [vmem:[#allocation2 + $0x8] sm:$0xff] 0.0
    $region21: #{tpu_custom_call.1} parent=1 // pred_fallthru
      _
    %v70 = vld [vmem:[#allocation3] sm:$0xff]
    %v71 = vld [vmem:[#allocation3 + $0x8] sm:$0xff]
    %v72 = vld [vmem:[#allocation6] sm:$0xff]
    %v73 = vld [vmem:[#allocation6 + $0x8] sm:$0xff]
    %v74 = vsub.f32 %v70, %v72
    %v75 = vsub.f32 %v71, %v73
    %v76 = vmax.f32 %v74, 0.0
    %v77 = vmax.f32 %v75, 0.0
    %v78 = vld [vmem:[#allocation2] sm:$0xff]
    %v79 = vld [vmem:[#allocation2 + $0x8] sm:$0xff]
    %v80 = vadd.f32 %v78, %v76
    %v81 = vadd.f32 %v79, %v77
    %82 = vst [vmem:[#allocation2] sm:$0xff] %v80
    %83 = vst [vmem:[#allocation2 + $0x8] sm:$0xff] %v81
    // Predicated region
    $region22: #{tpu_custom_call.1} parent=1 // pred_check
      %p84 = pneg %p64
    $region23: #{tpu_custom_call.1} parent=1 // pred_check_branch
      %86 = sbr.rel (%p84) target = $region25
    $region24: #{tpu_custom_call.1} parent=1 // pred_region
      %v87 = vld [vmem:[#allocation2] sm:$0xff]
      %v88 = vld [vmem:[#allocation2 + $0x8] sm:$0xff]
      %v89 = vadd.f32 %v87, %v88
      %90 = vadd.xlane.f32.xlu0 %v89
      %v91 = vpop.xlane.xlu0 %90
      %v92 = vrot.slane %v91, 4
      %v93 = vadd.f32 %v91, %v92
      %v94 = vrot.slane %v93, 2
      %v95 = vadd.f32 %v93, %v94
      %v96 = vrot.slane %v95, 1
      %v97 = vadd.f32 %v95, %v96
      %s98 = vtos %v97
      %s99 = scalar_lea.smem [#allocation8], 0
      %100 = sst [smem:[%s99]] %s98
    $region25: #{tpu_custom_call.1} parent=1 // pred_fallthru
      _
    // Predicated region
    $region26: #{tpu_custom_call.1} parent=1 // pred_check
      _
    $region27: #{tpu_custom_call.1} parent=1 // pred_check_branch
      %102 = sbr.rel (0) target = $region29
    $region28: #{tpu_custom_call.1} parent=1 // pred_region
      %104 = vsyncadd [#allocation5], 0
      %s106 = sshll.u32 %s2, 4
      %s107 = int_to_ptr.hbm [resolvable:$true] %s106
      %109 = dma.smem_to_hbm [#allocation8], 16, %s107, [#allocation5]
    $region29: #{tpu_custom_call.1} parent=1 // pred_fallthru
      _
    // Predicated region
    $region30: #{tpu_custom_call.1} parent=1 // pred_check
      _
    $region31: #{tpu_custom_call.1} parent=1 // pred_check_branch
      %111 = sbr.rel (0) target = $region33
    $region32: #{tpu_custom_call.1} parent=1 // pred_region
      %113 = dma.done [#allocation5], 16
    $region33: #{tpu_custom_call.1} parent=1 // pred_fallthru
      _
    %114 = sfence
    %115 = vsyncpa [#allocation4], 1
    %116 = vsyncpa [#allocation7], 1
    %117 = vsyncpa [#allocation5], 1

</llo_original>
